<compile_context>
chip_gen: v6e
topology: v6e:2x2x1
jax: 0.10.0
libtpu: 0.0.40
codegen_flags: <defaults>
</compile_context>

<pallas_src>
import functools

import jax
import jax.numpy as jnp
import numpy as np
from jax.experimental import pallas as pl
from jax.experimental.pallas import tpu as pltpu


def _conv_gemm_kernel(p_ref, w_ref, b_ref, o_ref):
    """One batch element: o = W (OC,K) @ patches (K,S) + bias, lane-dense in S."""
    acc = jnp.dot(w_ref[...], p_ref[0], preferred_element_type=jnp.float32)
    o_ref[0] = (acc + b_ref[...]).astype(o_ref.dtype)


def conv2d_gemm_pallas(patches, w_flat, bias2d):
    """patches: (N, K, S), w_flat: (OC, K), bias2d: (OC, 1) -> (N, OC, S)."""
    N, K, S = patches.shape
    OC = w_flat.shape[0]
    return pl.pallas_call(
        _conv_gemm_kernel,
        out_shape=jax.ShapeDtypeStruct((N, OC, S), patches.dtype),
        grid=(N,),
        in_specs=[
            pl.BlockSpec((1, K, S), lambda n: (n, 0, 0)),   # im2col patches
            pl.BlockSpec((OC, K), lambda n: (0, 0)),        # flattened weights
            pl.BlockSpec((OC, 1), lambda n: (0, 0)),        # bias column
        ],
        out_specs=pl.BlockSpec((1, OC, S), lambda n: (n, 0, 0)),  # lane-dense (S=256)
        compiler_params=pltpu.CompilerParams(
            dimension_semantics=("parallel",)
        ),
    )(patches, w_flat, bias2d)


def _im2col(x_nchw, KH, KW, pad):
    """(N, C, H, W) -> (N, KH*KW*C, Ho*Wo); row order = (kh, kw, c). Layout glue."""
    N, C, H, W = x_nchw.shape
    Ho = H + 2 * pad - KH + 1
    Wo = W + 2 * pad - KW + 1
    xp = jnp.pad(x_nchw, ((0, 0), (0, 0), (pad, pad), (pad, pad)))
    cols = [
        xp[:, :, kh:kh + Ho, kw:kw + Wo]
        for kh in range(KH)
        for kw in range(KW)
    ]
    p = jnp.stack(cols, axis=1)                  # (N, KH*KW, C, Ho, Wo)
    return p.reshape(N, KH * KW * C, Ho * Wo)


@functools.partial(jax.jit, static_argnames=("pad",))
def pixel_shuffle_block(x_nchw, w_oihw, bias, *, pad):
    """Conv2d(C, 4C, k, padding=pad) + PixelShuffle(2); NCHW in, NCHW out."""
    N, C, H, W = x_nchw.shape
    OC, _, KH, KW = w_oihw.shape
    Ho = H + 2 * pad - KH + 1
    Wo = W + 2 * pad - KW + 1
    r = 2

    # Layout glue, fused by XLA inside this jit.
    patches = _im2col(x_nchw, KH, KW, pad)                            # (N, K, S)
    w_flat = jnp.transpose(w_oihw, (0, 2, 3, 1)).reshape(OC, KH * KW * C)
    b2 = bias.reshape(OC, 1)

    y = conv2d_gemm_pallas(patches, w_flat, b2)                       # (N, OC, S)

    # PixelShuffle(2), PyTorch semantics:
    #   out[n, c, h*2+i, w*2+j] = y[n, c*4 + i*2 + j, h, w]
    y = y.reshape(N, C, r, r, Ho, Wo)
    y = jnp.transpose(y, (0, 1, 4, 2, 5, 3))                          # (N, C, Ho, r, Wo, r)
    return y.reshape(N, C, Ho * r, Wo * r)


if __name__ == "__main__":
    # Module hyperparameters: PixelShuffleBlock(channel=4, kernel=3, pad=1)
    channel, kernel, pad = 4, 3, 1
    scale_factor = 2
    out_channels = channel * scale_factor ** 2  # 16

    # Small deterministic inputs / params
    key = jax.random.PRNGKey(0)
    kx, kw, kb = jax.random.split(key, 3)
    N, H, W = 2, 16, 16
    x = jax.random.normal(kx, (N, channel, H, W), dtype=jnp.float32)       # NCHW
    w_oihw = jax.random.normal(
        kw, (out_channels, channel, kernel, kernel), dtype=jnp.float32) * 0.1
    bias = jax.random.normal(kb, (out_channels,), dtype=jnp.float32) * 0.1

    out = pixel_shuffle_block(x, w_oihw, bias, pad=pad)
    out = jax.block_until_ready(out)
    assert out.shape == (N, channel, H * scale_factor, W * scale_factor)

    # Reference: XLA conv (NCHW/OIHW) + pixel shuffle, to validate the kernel.
    y_ref = jax.lax.conv_general_dilated(
        x, w_oihw, window_strides=(1, 1), padding=((pad, pad), (pad, pad)),
        dimension_numbers=("NCHW", "OIHW", "NCHW"),
    ) + bias.reshape(1, out_channels, 1, 1)
    r = scale_factor
    y_ref = y_ref.reshape(N, channel, r, r, H, W)
    y_ref = jnp.transpose(y_ref, (0, 1, 4, 2, 5, 3)).reshape(
        N, channel, H * r, W * r)
    np.testing.assert_allclose(np.asarray(out), np.asarray(y_ref),
                               rtol=1e-4, atol=1e-4)

    print("KERNEL_OK")
</pallas_src>

<mosaic_0001>
module attributes {stable_mosaic.version = 11 : i64} {
  func.func @_conv_gemm_kernel(%arg0: i32, %arg1: memref<1x36x256xf32, #tpu.memory_space<vmem>>, %arg2: memref<16x36xf32, #tpu.memory_space<vmem>>, %arg3: memref<16x1xf32, #tpu.memory_space<vmem>>, %arg4: memref<1x16x256xf32, #tpu.memory_space<vmem>>) attributes {dimension_semantics = [#tpu.dimension_semantics<parallel>], iteration_bounds = array<i64: 2>, scalar_prefetch = 0 : i64, scratch_operands = 0 : i64, tpu.core_type = #tpu.core_type<tc>, window_params = [{transform_indices = @transform_0, window_bounds = array<i64: 1, 36, 256>}, {pipeline_mode = #tpu.pipeline_mode<synchronous>, transform_indices = @transform_1, window_bounds = array<i64: 16, 36>}, {pipeline_mode = #tpu.pipeline_mode<synchronous>, transform_indices = @transform_2, window_bounds = array<i64: 16, 1>}, {transform_indices = @transform_3, window_bounds = array<i64: 1, 16, 256>}]} {
    %c0 = arith.constant 0 : index
    %c0_0 = arith.constant 0 : index
    %0 = vector.load %arg2[%c0, %c0_0] : memref<16x36xf32, #tpu.memory_space<vmem>>, vector<16x36xf32>
    %c0_1 = arith.constant 0 : index
    %c0_2 = arith.constant 0 : index
    %c0_3 = arith.constant 0 : index
    %1 = vector.load %arg1[%c0_1, %c0_2, %c0_3] : memref<1x36x256xf32, #tpu.memory_space<vmem>>, vector<1x36x256xf32>
    %2 = vector.shape_cast %1 : vector<1x36x256xf32> to vector<36x256xf32>
    %cst = arith.constant dense<0.000000e+00> : vector<16x256xf32>
    %3 = tpu.matmul %0, %2, %cst {dimension_numbers = #tpu.dot_dimension_numbers<[1], [0], [0], [1], [0, 0, 1, 1], [], []>} : vector<16x36xf32>, vector<36x256xf32>, vector<16x256xf32> -> vector<16x256xf32>
    %c0_4 = arith.constant 0 : index
    %c0_5 = arith.constant 0 : index
    %4 = vector.load %arg3[%c0_4, %c0_5] : memref<16x1xf32, #tpu.memory_space<vmem>>, vector<16x1xf32>
    %5 = vector.broadcast %4 : vector<16x1xf32> to vector<16x256xf32>
    %6 = arith.addf %3, %5 : vector<16x256xf32>
    %c0_6 = arith.constant 0 : index
    %c0_7 = arith.constant 0 : index
    %c0_8 = arith.constant 0 : index
    %7 = vector.load %arg4[%c0_6, %c0_7, %c0_8] : memref<1x16x256xf32, #tpu.memory_space<vmem>>, vector<1x16x256xf32>
    %8 = vector.shape_cast %7 : vector<1x16x256xf32> to vector<16x256xf32>
    %9 = vector.shape_cast %6 : vector<16x256xf32> to vector<1x16x256xf32>
    tpu.vector_store %arg4[%c0_6, %c0_7, %c0_8], %9 {strides = array<i32>} : memref<1x16x256xf32, #tpu.memory_space<vmem>>, vector<1x16x256xf32>,
    return
  }
  func.func @transform_0(%arg0: i32) -> (i32, i32, i32) {
    %c0_i32 = arith.constant 0 : i32
    %c0_i32_0 = arith.constant 0 : i32
    %c0_i32_1 = arith.constant 0 : i32
    return %arg0, %c0_i32, %c0_i32_0 : i32, i32, i32
  }
  func.func @transform_1(%arg0: i32) -> (i32, i32) {
    %c0_i32 = arith.constant 0 : i32
    %c0_i32_0 = arith.constant 0 : i32
    %c0_i32_1 = arith.constant 0 : i32
    return %c0_i32, %c0_i32_0 : i32, i32
  }
  func.func @transform_2(%arg0: i32) -> (i32, i32) {
    %c0_i32 = arith.constant 0 : i32
    %c0_i32_0 = arith.constant 0 : i32
    %c0_i32_1 = arith.constant 0 : i32
    return %c0_i32, %c0_i32_0 : i32, i32
  }
  func.func @transform_3(%arg0: i32) -> (i32, i32, i32) {
    %c0_i32 = arith.constant 0 : i32
    %c0_i32_0 = arith.constant 0 : i32
    %c0_i32_1 = arith.constant 0 : i32
    return %arg0, %c0_i32, %c0_i32_0 : i32, i32, i32
  }
}

</mosaic_0001>

<llo_original>
// kernel: pixel_shuffle_block.1
$region0: #{pixel_shuffle_block.1}
  #allocation0 [shape = 'u32[]', space=smem, size = 0x4, offset = 0x4, fixed_abs, tag = 'smem constant byte address 0x4 - core index']
  #allocation1 [shape = 'u32[144,128]{1,0:T(1,128)}', space=vmem, size = 0x12000, scoped, tag = 'internal scratch']
  %s0 = inlined_call_operand.vmem [shape: f32[2,36,256], index: 0, kind: input, shape index: {}]
  %s1 = inlined_call_operand.vmem [shape: f32[16,36], index: 1, kind: input, shape index: {}]
  %s2 = inlined_call_operand.vmem [shape: f32[16,1], index: 2, kind: input, shape index: {}]
  %s3 = inlined_call_operand.vmem [shape: f32[2,16,256], index: 3, kind: output, shape index: {}]
  %s4 = sld [smem:[#allocation0]]
  $region45: #{pixel_shuffle_block.1} parent=0
    _
  %s6 = ssub.s32 1, %s4
  %s7 = scalar_select 0, %s6, %s4
  loop: start=0, step=1, limit=4
  $region2: #{pixel_shuffle_block.1} parent=0 // loop_pre_header
    _
  $region3: #{pixel_shuffle_block.1} parent=0 // loop_header
    %s9 = sphi 0, %s13
    %p10 = scmp.ge.s32.totalorder %s9, 4
    %s19 = sphi 0, %s21
    %s22 = sphi 0, %s19
    %s23 = sphi 0, %s22
    %s39 = sphi 0, %s23
    %s43 = sphi 0, %s43
    %s45 = sphi 0, %s43
    %s46 = sphi 0, %s45
    %s60 = sphi 0, %s46
    %s64 = sphi 0, %s64
    %s66 = sphi 0, %s64
    %s67 = sphi 0, %s66
    %s81 = sphi 0, %s67
    %s87 = sphi 0, %s89
    %s90 = sphi 0, %s87
    %s91 = sphi 0, %s90
    %s107 = sphi 0, %s91
  $region4: #{pixel_shuffle_block.1} parent=0 // loop_header_branch
    %12 = sbr.rel (%p10) target = $region8
  $region5: #{pixel_shuffle_block.1} parent=0 // loop_body
    %s14 = ssub.s32 %s9, 1
    %s15 = ssub.s32 %s9, 2
    %s16 = sadd.s32 %s9, 1
    %s17 = ssub.s32 %s9, %s16
    %p18 = scmp.eq.s32.totalorder %s17, 0
    %s20 = sadd.s32 %s19, 1
    %s21 = scalar_select %p18, %s19, %s20
    %p24 = pneg %p18
    %p25 = scmp.eq.s32.totalorder %s9, 1
    %p26 = por %p24, %p25
    %p27 = scmp.ne.s32.totalorder %s19, %s22
    %p28 = scmp.eq.s32.totalorder %s9, 0
    %p29 = por %p27, %p28
    %p30 = scmp.ne.s32.totalorder %s19, %s22
    %p31 = scmp.eq.s32.totalorder %s14, 1
    %p32 = por %p30, %p31
    %p33 = scmp.ne.s32.totalorder %s22, %s23
    %p34 = scmp.eq.s32.totalorder %s14, 0
    %p35 = por %p33, %p34
    %p36 = scmp.ne.s32.totalorder %s22, %s23
    %p37 = scmp.eq.s32.totalorder %s15, 1
    %p38 = por %p36, %p37
    %p40 = scmp.ne.s32.totalorder %s23, %s39
    %p41 = scmp.eq.s32.totalorder %s15, 0
    %p42 = por %p40, %p41
    %s44 = sadd.s32 %s43, 1
    %p47 = scmp.eq.s32.totalorder %s9, 1
    %p48 = scmp.ne.s32.totalorder %s43, %s45
    %p49 = scmp.eq.s32.totalorder %s9, 0
    %p50 = por %p48, %p49
    %p51 = scmp.ne.s32.totalorder %s43, %s45
    %p52 = scmp.eq.s32.totalorder %s14, 1
    %p53 = por %p51, %p52
    %p54 = scmp.ne.s32.totalorder %s45, %s46
    %p55 = scmp.eq.s32.totalorder %s14, 0
    %p56 = por %p54, %p55
    %p57 = scmp.ne.s32.totalorder %s45, %s46
    %p58 = scmp.eq.s32.totalorder %s15, 1
    %p59 = por %p57, %p58
    %p61 = scmp.ne.s32.totalorder %s46, %s60
    %p62 = scmp.eq.s32.totalorder %s15, 0
    %p63 = por %p61, %p62
    %s65 = sadd.s32 %s64, 1
    %p68 = scmp.eq.s32.totalorder %s9, 1
    %p69 = scmp.ne.s32.totalorder %s64, %s66
    %p70 = scmp.eq.s32.totalorder %s9, 0
    %p71 = por %p69, %p70
    %p72 = scmp.ne.s32.totalorder %s64, %s66
    %p73 = scmp.eq.s32.totalorder %s14, 1
    %p74 = por %p72, %p73
    %p75 = scmp.ne.s32.totalorder %s66, %s67
    %p76 = scmp.eq.s32.totalorder %s14, 0
    %p77 = por %p75, %p76
    %p78 = scmp.ne.s32.totalorder %s66, %s67
    %p79 = scmp.eq.s32.totalorder %s15, 1
    %p80 = por %p78, %p79
    %p82 = scmp.ne.s32.totalorder %s67, %s81
    %p83 = scmp.eq.s32.totalorder %s15, 0
    %p84 = por %p82, %p83
    %s85 = ssub.s32 %s9, %s16
    %p86 = scmp.eq.s32.totalorder %s85, 0
    %s88 = sadd.s32 %s87, 1
    %s89 = scalar_select %p86, %s87, %s88
    %p92 = pneg %p86
    %p93 = scmp.eq.s32.totalorder %s9, 1
    %p94 = por %p92, %p93
    %p95 = scmp.ne.s32.totalorder %s87, %s90
    %p96 = scmp.eq.s32.totalorder %s9, 0
    %p97 = por %p95, %p96
    %p98 = scmp.ne.s32.totalorder %s87, %s90
    %p99 = scmp.eq.s32.totalorder %s14, 1
    %p100 = por %p98, %p99
    %p101 = scmp.ne.s32.totalorder %s90, %s91
    %p102 = scmp.eq.s32.totalorder %s14, 0
    %p103 = por %p101, %p102
    %p104 = scmp.ne.s32.totalorder %s90, %s91
    %p105 = scmp.eq.s32.totalorder %s15, 1
    %p106 = por %p104, %p105
    %p108 = scmp.ne.s32.totalorder %s91, %s107
    %p109 = scmp.eq.s32.totalorder %s15, 0
    %p110 = por %p108, %p109
    %p111 = scmp.le.s32.totalorder 1, %s9
    %p112 = scmp.lt.s32.totalorder %s9, 3
    %p113 = pnand %p111, %p112
    %p114 = pneg %p113
    // Predicated region
    $region9: #{pixel_shuffle_block.1} parent=5 // pred_check
      _
    $region10: #{pixel_shuffle_block.1} parent=5 // pred_check_branch
      %116 = sbr.rel (%p113) target = $region12
    $region11: #{pixel_shuffle_block.1} parent=5 // pred_region
      %s117 = ssub.s32 %s9, 1
      // Predicated region
      $region13: #{pixel_shuffle_block.1} parent=11 // pred_check
        %p118 = pneg %p56
      $region14: #{pixel_shuffle_block.1} parent=11 // pred_check_branch
        %120 = sbr.rel (%p118) target = $region16
      $region15: #{pixel_shuffle_block.1} parent=11 // pred_region
        _
      $region16: #{pixel_shuffle_block.1} parent=11 // pred_fallthru
        _
      // Predicated region
      $region17: #{pixel_shuffle_block.1} parent=11 // pred_check
        %p121 = pneg %p77
      $region18: #{pixel_shuffle_block.1} parent=11 // pred_check_branch
        %123 = sbr.rel (%p121) target = $region20
      $region19: #{pixel_shuffle_block.1} parent=11 // pred_region
        _
      $region20: #{pixel_shuffle_block.1} parent=11 // pred_fallthru
        _
    $region12: #{pixel_shuffle_block.1} parent=5 // pred_fallthru
      _
    %p124 = scmp.lt.s32.totalorder %s9, 2
    // Predicated region
    $region21: #{pixel_shuffle_block.1} parent=5 // pred_check
      %p125 = pneg %p124
    $region22: #{pixel_shuffle_block.1} parent=5 // pred_check_branch
      %127 = sbr.rel (%p125) target = $region24
    $region23: #{pixel_shuffle_block.1} parent=5 // pred_region
      // Predicated region
      $region25: #{pixel_shuffle_block.1} parent=23 // pred_check
        %p128 = pneg %p29
      $region26: #{pixel_shuffle_block.1} parent=23 // pred_check_branch
        %130 = sbr.rel (%p128) target = $region28
      $region27: #{pixel_shuffle_block.1} parent=23 // pred_region
        %p131 = scmp.lt.s32.totalorder %s9, 1
        %s132 = scalar_select %p131, %s9, 1
        %s133 = smul.addr %s132, 10
        %s134 = smul.addr %s133, 8
        %s135 = scalar_lea.vmem %s0, %s134
      $region28: #{pixel_shuffle_block.1} parent=23 // pred_fallthru
        _
    $region24: #{pixel_shuffle_block.1} parent=5 // pred_fallthru
      _
    %p136 = scmp.le.s32.totalorder 1, %s9
    %p137 = scmp.lt.s32.totalorder %s9, 3
    %p138 = pnand %p136, %p137
    %p139 = pneg %p138
    // Predicated region
    $region29: #{pixel_shuffle_block.1} parent=5 // pred_check
      _
    $region30: #{pixel_shuffle_block.1} parent=5 // pred_check_branch
      %141 = sbr.rel (%p138) target = $region32
    $region31: #{pixel_shuffle_block.1} parent=5 // pred_region
      %s142 = ssub.s32 %s9, 1
      %p143 = scmp.lt.s32.totalorder %s14, 1
      %s144 = scalar_select %p143, %s14, 1
      %s145 = smul.addr %s144, 10
      %s146 = smul.addr %s145, 8
      %s147 = scalar_lea.vmem %s0, %s146
      %p148 = pneg %p35
      %p149 = pneg %p32
      %p150 = pneg %p56
      %p151 = pneg %p53
      %p152 = pneg %p77
      %p153 = pneg %p74
      %p154 = pneg %p103
      %p155 = pneg %p100
      %p156 = scmp.lt.s32.totalorder %s14, 1
      %s157 = scalar_select %p156, %s14, 1
      %s158 = smul.addr %s157, 4
      %s159 = smul.addr %s158, 8
      %s160 = scalar_lea.vmem %s3, %s159
      %p161 = scmp.lt.s32.totalorder %s14, 1
      %s162 = scalar_select %p161, %s14, 1
      %s163 = smul.addr %s162, 10
      %s164 = smul.addr %s163, 8
      %s165 = scalar_lea.vmem %s0, %s164
      %p166 = scmp.lt.s32.totalorder %s14, 1
      %s167 = scalar_select %p166, %s14, 1
      %s168 = smul.addr %s167, 4
      %s169 = smul.addr %s168, 8
      %s170 = scalar_lea.vmem %s3, %s169
      %v171 = vld [vmem:[%s1] sm:$0xff]
      %v172 = vld [vmem:[%s1 + $0x8] sm:$0xff]
      %v173 = vld [vmem:[%s165] sm:$0xff]
      %v174 = vld [vmem:[%s165 + $0x8] sm:$0xff]
      %v175 = vld [vmem:[%s165 + $0x10] sm:$0xff]
      %v176 = vld [vmem:[%s165 + $0x18] sm:$0xff]
      %v177 = vld [vmem:[%s165 + $0x20] sm:$0xff]
      %v178 = vld [vmem:[%s165 + $0x28] sm:$0xff]
      %v179 = vld [vmem:[%s165 + $0x30] sm:$0xff]
      %v180 = vld [vmem:[%s165 + $0x38] sm:$0xff]
      %v181 = vld [vmem:[%s165 + $0x40] sm:$0xf]
      %v182 = vld [vmem:[%s165 + $0x48] sm:$0xf]
      %v183 = vld [vmem:[%s2] sm:$0xff]
      %v184 = vld [vmem:[%s2 + $0x8] sm:$0xff]
      %186 = vset.pattern.permute.xlu0 0
      %187 = vperm.xlu0 %186, %v183
      %v188 = vpop.permute.xlu0 %187
      %191 = vset.pattern.permute.xlu0 0
      %192 = vperm.xlu0 %191, %v184
      %v193 = vpop.permute.xlu0 %192
      %vm195 = vcmask 293888
      %v197 = vsel %vm195, %v171, 0
      %v200 = vsel %vm195, %v172, 0
      %vm202 = vcmask 1043456
      %v204 = vsel %vm202, %v181, 0
      %v207 = vsel %vm202, %v182, 0
      %209 = vmatprep.subr.mxu0 0.0
      %210 = vmatpush1.msra.mxu0 0.0
      %211 = vmatprep.subr.mxu0 0.0
      %212 = vmatpush1.msra.mxu0 0.0
      %213 = vmatprep.subr.mxu0 0.0
      %214 = vmatpush1.msra.mxu0 0.0
      %215 = vmatprep.subr.mxu0 0.0
      %216 = vmatpush1.msra.mxu0 0.0
      %217 = vmatprep.subr.mxu0 0.0
      %218 = vmatpush1.msra.mxu0 0.0
      %219 = vmatprep.subr.mxu0 0.0
      %220 = vmatpush1.msra.mxu0 0.0
      %221 = vmatprep.subr.mxu0 0.0
      %222 = vmatpush1.msra.mxu0 0.0
      %223 = vmatprep.subr.mxu0 0.0
      %224 = vmatpush1.msra.mxu0 0.0
      %225 = vmatprep.subr.mxu0 0.0
      %226 = vmatpush1.msra.mxu0 0.0
      %227 = vmatprep.subr.mxu0 0.0
      %228 = vmatpush1.msra.mxu0 0.0
      %229 = vmatprep.subr.mxu0 0.0
      %230 = vmatpush1.msra.mxu0 0.0
      %231 = vmatprep.subr.mxu0 %v207
      %232 = vmatpush1.msra.mxu0 %v204
      %233 = vmatprep.subr.mxu0 %v180
      %234 = vmatpush1.msra.mxu0 %v179
      %235 = vmatprep.subr.mxu0 %v178
      %236 = vmatpush1.msra.mxu0 %v177
      %237 = vmatprep.subr.mxu0 %v176
      %238 = vmatpush1.msra.mxu0 %v175
      %239 = vmatprep.subr.mxu0 %v174
      %240 = vmatpush1.msra.mxu0 %v173
      %241 = vmatprep.subr.mxu0 0.0
      %242 = vmatpush2.msra.mxu0 0.0
      %243 = vmatprep.subr.mxu0 0.0
      %244 = vmatpush2.msra.mxu0 0.0
      %245 = vmatprep.subr.mxu0 0.0
      %246 = vmatpush2.msra.mxu0 0.0
      %247 = vmatprep.subr.mxu0 0.0
      %248 = vmatpush2.msra.mxu0 0.0
      %249 = vmatprep.subr.mxu0 0.0
      %250 = vmatpush2.msra.mxu0 0.0
      %251 = vmatprep.subr.mxu0 0.0
      %252 = vmatpush2.msra.mxu0 0.0
      %253 = vmatprep.subr.mxu0 0.0
      %254 = vmatpush2.msra.mxu0 0.0
      %255 = vmatprep.subr.mxu0 0.0
      %256 = vmatpush2.msra.mxu0 0.0
      %257 = vmatprep.subr.mxu0 0.0
      %258 = vmatpush2.msra.mxu0 0.0
      %259 = vmatprep.subr.mxu0 0.0
      %260 = vmatpush2.msra.mxu0 0.0
      %261 = vmatprep.subr.mxu0 0.0
      %262 = vmatpush2.msra.mxu0 0.0
      %263 = vmatprep.subr.mxu0 0.0
      %264 = vmatpush2.msra.mxu0 0.0
      %265 = vmatprep.subr.mxu0 0.0
      %266 = vmatpush2.msra.mxu0 0.0
      %267 = vmatprep.subr.mxu0 0.0
      %268 = vmatpush2.msra.mxu0 0.0
      %269 = vmatprep.subr.mxu0 0.0
      %270 = vmatpush2.msra.mxu0 0.0
      %271 = vmatprep.subr.mxu0 0.0
      %272 = vmatpush2.msra.mxu0 0.0
      %273 = vmatprep.mubr.f32.mxu0 0.0
      %274 = vmatmul.mubr.f32.gmra.mxu0 %v197
      %v275 = vpop.f32.mrf.mxu0
      %v276 = vadd.f32 %v188, %v275
      %v277 = vpop.f32.mrf.mxu0
      %v278 = vadd.f32 %v188, %v277
      %279 = vmatprep.mubr.f32.mxu0 0.0
      %280 = vmatmul.mubr.f32.gmra.mxu0 %v200
      %v281 = vpop.f32.mrf.mxu0
      %v282 = vadd.f32 %v193, %v281
      %v283 = vpop.f32.mrf.mxu0
      %v284 = vadd.f32 %v193, %v283
      %285 = vdwg.mxu0
      %286 = vst [vmem:[%s170] sm:$0xff] %v276
      %287 = vst [vmem:[%s170 + $0x8] sm:$0xff] %v278
      %288 = vst [vmem:[%s170 + $0x10] sm:$0xff] %v282
      %289 = vst [vmem:[%s170 + $0x18] sm:$0xff] %v284
      %p290 = scmp.lt.s32.totalorder %s14, 1
      %s291 = scalar_select %p290, %s14, 1
      %s292 = smul.addr %s291, 4
      %s293 = smul.addr %s292, 8
      %s294 = scalar_lea.vmem %s3, %s293
      // Predicated region
      $region33: #{pixel_shuffle_block.1} parent=31 // pred_check
        %p295 = pneg %p100
      $region34: #{pixel_shuffle_block.1} parent=31 // pred_check_branch
        %297 = sbr.rel (%p295) target = $region36
      $region35: #{pixel_shuffle_block.1} parent=31 // pred_region
        _
      $region36: #{pixel_shuffle_block.1} parent=31 // pred_fallthru
        _
    $region32: #{pixel_shuffle_block.1} parent=5 // pred_fallthru
      _
    %p298 = scmp.le.s32.totalorder 2, %s9
    // Predicated region
    $region37: #{pixel_shuffle_block.1} parent=5 // pred_check
      %p299 = pneg %p298
    $region38: #{pixel_shuffle_block.1} parent=5 // pred_check_branch
      %301 = sbr.rel (%p299) target = $region40
    $region39: #{pixel_shuffle_block.1} parent=5 // pred_region
      %s302 = ssub.s32 %s9, 2
      // Predicated region
      $region41: #{pixel_shuffle_block.1} parent=39 // pred_check
        %p303 = pneg %p106
      $region42: #{pixel_shuffle_block.1} parent=39 // pred_check_branch
        %305 = sbr.rel (%p303) target = $region44
      $region43: #{pixel_shuffle_block.1} parent=39 // pred_region
        %p306 = scmp.lt.s32.totalorder %s15, 1
        %s307 = scalar_select %p306, %s15, 1
        %s308 = smul.addr %s307, 4
        %s309 = smul.addr %s308, 8
        %s310 = scalar_lea.vmem %s3, %s309
      $region44: #{pixel_shuffle_block.1} parent=39 // pred_fallthru
        _
    $region40: #{pixel_shuffle_block.1} parent=5 // pred_fallthru
      _
  $region6: #{pixel_shuffle_block.1} parent=0 // loop_footer
    %s13 = sadd.s32 1, %s9
  $region7: #{pixel_shuffle_block.1} parent=0 // loop_footer_branch
    %8 = sbr.rel target = $region3
  $region8: #{pixel_shuffle_block.1} parent=0 // loop_exit
    _

</llo_original>
